<compile_context>
chip_gen: v5e
topology: v5e:2x2
jax: 0.10.0
libtpu: 0.0.40
codegen_flags: <defaults>
</compile_context>

<pallas_src>
import functools
import math

import jax
import jax.numpy as jnp
from jax.experimental import pallas as pl
from jax.experimental.pallas import tpu as pltpu


# ----------------------------- Pallas kernel ------------------------------- #

def _encoder_block_kernel(xh_ref, x2d_ref, wqkv_ref, wo_ref, bo_ref,
                          w1_ref, b1_ref, w2_ref, b2_ref, o_ref,
                          *, batch, seq, n_heads, head_dim, embed_dim,
                          matmul_dtype):
    B, S, H, D, E = batch, seq, n_heads, head_dim, embed_dim
    md = matmul_dtype

    # ---- fused QKV projection: one MXU matmul for q|k|v of every head ------
    # xh is head-major: row (h*B + b)*S + s holds x[b, s, h*D:(h+1)*D].
    xh = xh_ref[...].astype(md)                                  # [H*B*S, D]
    qkv = jnp.dot(xh, wqkv_ref[...],
                  preferred_element_type=jnp.float32)            # [H*B*S, 3D]
    qkv = qkv.reshape(H * B, S, 3 * D)                           # leading split (free)

    q = qkv[:, :, 0 * D:1 * D].astype(md)                        # [H*B, S, D]
    k = qkv[:, :, 1 * D:2 * D].astype(md)
    v = qkv[:, :, 2 * D:3 * D].astype(md)

    # ---- attention: all (head, batch) pairs in ONE batched contraction -----
    # Contract on D directly (no kh.T), batch dim leading -> MXU friendly.
    scale = 1.0 / math.sqrt(E)  # module scales energy by 1/sqrt(embedding_dim)
    s = jnp.einsum('bqd,bkd->bqk', q, k,
                   preferred_element_type=jnp.float32) * scale   # [H*B, S, S]
    # TODO(synk): src_mask is None in this forward; masked_fill path not implemented.
    s = s - jnp.max(s, axis=-1, keepdims=True)
    p = jnp.exp(s)
    denom = jnp.sum(p, axis=-1, keepdims=True)
    # approx=True would move this onto the otherwise-idle EUP slot at scale;
    # kept exact here so the toy-size reference check passes at 2e-4.
    p = p * pl.reciprocal(denom, approx=False)

    o = jnp.einsum('bqk,bkd->bqd', p.astype(md), v,
                   preferred_element_type=jnp.float32)           # [H*B, S, D]

    # ---- fc_out: fold the head "un-interleave" into the projection ---------
    # concat(head_outs) @ Wo^T == sum_h head_h @ Wo^T[h*D:(h+1)*D, :]
    # -> no lane-axis concatenate, no transpose.
    x2d = x2d_ref[...]                                           # [B*S, E] f32
    proj = jnp.zeros((B * S, E), jnp.float32)
    for h in range(H):                                           # tiny static loop
        o_h = o[h * B:(h + 1) * B].reshape(B * S, D).astype(md)
        proj = proj + jnp.dot(o_h, wo_ref[h * D:(h + 1) * D, :],
                              preferred_element_type=jnp.float32)
    res = proj + bo_ref[...] + x2d                               # bias + residual

    # ---- feed-forward: Linear -> ReLU -> Linear -> ReLU (f32 epilogue) -----
    h1 = jnp.dot(res.astype(md), w1_ref[...],
                 preferred_element_type=jnp.float32) + b1_ref[...]
    h1 = jnp.maximum(h1, 0.0)                                    # [B*S, E*F] (128 lanes)
    out = jnp.dot(h1.astype(md), w2_ref[...],
                  preferred_element_type=jnp.float32) + b2_ref[...]
    out = jnp.maximum(out, 0.0)

    o_ref[...] = out.astype(o_ref.dtype)


# ------------------------------- wrapper ------------------------------------ #

def encoder_block_pallas(x, params, *, n_heads, matmul_dtype=jnp.float32):
    B, S, E = x.shape
    H = n_heads
    D = E // H
    Hh = params["w1"].shape[1]  # E * forward_dim

    # Head-major view (fused QKV + batched attention) and flat row-major view
    # (residual + FFN); both built by XLA outside the kernel.
    xh = x.reshape(B, S, H, D).transpose(2, 0, 1, 3).reshape(H * B * S, D)
    x2d = x.reshape(B * S, E)

    cast = lambda w: w.astype(matmul_dtype)
    wqkv, wo, w1, w2 = cast(params["wqkv"]), cast(params["wo"]), cast(params["w1"]), cast(params["w2"])
    bo, b1, b2 = params["bo"], params["b1"], params["b2"]

    kernel = functools.partial(
        _encoder_block_kernel, batch=B, seq=S, n_heads=H, head_dim=D,
        embed_dim=E, matmul_dtype=matmul_dtype)

    flops = (2 * H * B * S * D * 3 * D          # fused QKV
             + 2 * H * B * S * S * D * 2        # QK^T and PV
             + 2 * B * S * E * E                # fc_out
             + 2 * B * S * E * Hh * 2)          # FFN
    bytes_accessed = (sum(int(a.size) * a.dtype.itemsize
                          for a in (xh, x2d, wqkv, wo, bo, w1, b1, w2, b2))
                      + B * S * E * x.dtype.itemsize)

    out2d = pl.pallas_call(
        kernel,
        out_shape=jax.ShapeDtypeStruct((B * S, E), x.dtype),
        # Whole problem in one grid step at these toy sizes (amortizes the
        # ~0.35us/step overhead).  At scale: tile B*S on a "parallel" axis
        # (v7x: 2 TensorCores) and K-tile the FFN weights for v7x VMEM.
        grid=(1,),
        in_specs=[
            pl.BlockSpec((H * B * S, D), lambda i: (0, 0)),   # xh (head-major)
            pl.BlockSpec((B * S, E), lambda i: (0, 0)),        # x (row-major)
            pl.BlockSpec((D, 3 * D), lambda i: (0, 0)),        # fused wq|wk|wv (pre-T)
            pl.BlockSpec((E, E), lambda i: (0, 0)),            # wo (pre-T)
            pl.BlockSpec((1, E), lambda i: (0, 0)),            # bo
            pl.BlockSpec((E, Hh), lambda i: (0, 0)),           # w1 (pre-T)
            pl.BlockSpec((1, Hh), lambda i: (0, 0)),           # b1
            pl.BlockSpec((Hh, E), lambda i: (0, 0)),           # w2 (pre-T)
            pl.BlockSpec((1, E), lambda i: (0, 0)),            # b2
        ],
        out_specs=pl.BlockSpec((B * S, E), lambda i: (0, 0)),
        compiler_params=pltpu.CompilerParams(
            dimension_semantics=("arbitrary",),
            vmem_limit_bytes=32 * 1024 * 1024),
        cost_estimate=pl.CostEstimate(
            flops=flops, transcendentals=H * B * S * S,
            bytes_accessed=bytes_accessed),
    )(xh, x2d, wqkv, wo, bo, w1, b1, w2, b2)

    return out2d.reshape(B, S, E)


# --------------------------- parameter setup -------------------------------- #

def make_params(key, embed_dim, n_heads, forward_dim):
    D = embed_dim // n_heads
    Hh = embed_dim * forward_dim
    ks = jax.random.split(key, 8)
    scale = 0.1

    # Raw PyTorch-shaped weights.
    wq = jax.random.normal(ks[0], (D, D), jnp.float32) * scale   # Linear(D, D, bias=False), shared across heads
    wk = jax.random.normal(ks[1], (D, D), jnp.float32) * scale
    wv = jax.random.normal(ks[2], (D, D), jnp.float32) * scale
    wo = jax.random.normal(ks[3], (embed_dim, embed_dim), jnp.float32) * scale  # fc_out: Linear(E, E)
    bo = jax.random.normal(ks[4], (embed_dim,), jnp.float32) * scale
    w1 = jax.random.normal(ks[5], (Hh, embed_dim), jnp.float32) * scale          # Linear(E, E*F)
    b1 = jax.random.normal(ks[6], (Hh,), jnp.float32) * scale
    w2 = jax.random.normal(ks[7], (embed_dim, Hh), jnp.float32) * scale          # Linear(E*F, E)
    b2 = jnp.zeros((embed_dim,), jnp.float32)

    kernel_params = dict(
        wqkv=jnp.concatenate([wq.T, wk.T, wv.T], axis=1),   # [D, 3D] fused QKV
        wo=wo.T, bo=bo.reshape(1, -1),
        w1=w1.T, b1=b1.reshape(1, -1),
        w2=w2.T, b2=b2.reshape(1, -1),
    )
    raw_params = dict(wq=wq, wk=wk, wv=wv, wo=wo, bo=bo, w1=w1, b1=b1, w2=w2, b2=b2)
    return kernel_params, raw_params


# --------------------------- pure-JAX reference ------------------------------ #

def encoder_block_reference(x, raw, *, n_heads):
    B, S, E = x.shape
    D = E // n_heads
    xh = x.reshape(B, S, n_heads, D)

    q = jnp.einsum('bshd,od->bsho', xh, raw["wq"])
    k = jnp.einsum('bshd,od->bsho', xh, raw["wk"])
    v = jnp.einsum('bshd,od->bsho', xh, raw["wv"])

    energy = jnp.einsum('bqhd,bkhd->bhqk', q, k) / math.sqrt(E)
    attn = jax.nn.softmax(energy, axis=-1)
    out = jnp.einsum('bhqk,bkhd->bqhd', attn, v).reshape(B, S, E)
    out = out @ raw["wo"].T + raw["bo"]

    res = out + x
    h1 = jnp.maximum(res @ raw["w1"].T + raw["b1"], 0.0)
    return jnp.maximum(h1 @ raw["w2"].T + raw["b2"], 0.0)


# --------------------------------- main -------------------------------------- #

if __name__ == "__main__":
    B, S = 2, 8
    embedding_dim, n_heads, forward_dim = 32, 4, 4

    key = jax.random.PRNGKey(0)
    kx, kp = jax.random.split(key)
    x = jax.random.normal(kx, (B, S, embedding_dim), jnp.float32)
    kernel_params, raw_params = make_params(kp, embedding_dim, n_heads, forward_dim)

    out = encoder_block_pallas(x, kernel_params, n_heads=n_heads)
    out = jax.block_until_ready(out)

    ref = encoder_block_reference(x, raw_params, n_heads=n_heads)
    assert out.shape == (B, S, embedding_dim)
    assert jnp.allclose(out, ref, atol=2e-4, rtol=2e-4), "mismatch vs reference"

    print("KERNEL_OK")
</pallas_src>

<mosaic_0001>
module attributes {stable_mosaic.version = 11 : i64} {
  func.func @_encoder_block_kernel(%arg0: i32, %arg1: memref<64x8xf32, #tpu.memory_space<vmem>>, %arg2: memref<16x32xf32, #tpu.memory_space<vmem>>, %arg3: memref<8x24xf32, #tpu.memory_space<vmem>>, %arg4: memref<32x32xf32, #tpu.memory_space<vmem>>, %arg5: memref<1x32xf32, #tpu.memory_space<vmem>>, %arg6: memref<32x128xf32, #tpu.memory_space<vmem>>, %arg7: memref<1x128xf32, #tpu.memory_space<vmem>>, %arg8: memref<128x32xf32, #tpu.memory_space<vmem>>, %arg9: memref<1x32xf32, #tpu.memory_space<vmem>>, %arg10: memref<16x32xf32, #tpu.memory_space<vmem>>) attributes {dimension_semantics = [#tpu.dimension_semantics<arbitrary>], iteration_bounds = array<i64: 1>, scalar_prefetch = 0 : i64, scratch_operands = 0 : i64, tpu.core_type = #tpu.core_type<tc>, window_params = [{pipeline_mode = #tpu.pipeline_mode<synchronous>, transform_indices = @transform_0, window_bounds = array<i64: 64, 8>}, {pipeline_mode = #tpu.pipeline_mode<synchronous>, transform_indices = @transform_1, window_bounds = array<i64: 16, 32>}, {pipeline_mode = #tpu.pipeline_mode<synchronous>, transform_indices = @transform_2, window_bounds = array<i64: 8, 24>}, {pipeline_mode = #tpu.pipeline_mode<synchronous>, transform_indices = @transform_3, window_bounds = array<i64: 32, 32>}, {pipeline_mode = #tpu.pipeline_mode<synchronous>, transform_indices = @transform_4, window_bounds = array<i64: 1, 32>}, {pipeline_mode = #tpu.pipeline_mode<synchronous>, transform_indices = @transform_5, window_bounds = array<i64: 32, 128>}, {pipeline_mode = #tpu.pipeline_mode<synchronous>, transform_indices = @transform_6, window_bounds = array<i64: 1, 128>}, {pipeline_mode = #tpu.pipeline_mode<synchronous>, transform_indices = @transform_7, window_bounds = array<i64: 128, 32>}, {pipeline_mode = #tpu.pipeline_mode<synchronous>, transform_indices = @transform_8, window_bounds = array<i64: 1, 32>}, {pipeline_mode = #tpu.pipeline_mode<synchronous>, transform_indices = @transform_9, window_bounds = array<i64: 16, 32>}]} {
    %c0 = arith.constant 0 : index
    %c0_0 = arith.constant 0 : index
    %0 = vector.load %arg1[%c0, %c0_0] : memref<64x8xf32, #tpu.memory_space<vmem>>, vector<64x8xf32>
    %c0_1 = arith.constant 0 : index
    %c0_2 = arith.constant 0 : index
    %1 = vector.load %arg3[%c0_1, %c0_2] : memref<8x24xf32, #tpu.memory_space<vmem>>, vector<8x24xf32>
    %cst = arith.constant dense<0.000000e+00> : vector<64x24xf32>
    %2 = tpu.matmul %0, %1, %cst {dimension_numbers = #tpu.dot_dimension_numbers<[1], [0], [0], [1], [0, 0, 1, 1], [], []>} : vector<64x8xf32>, vector<8x24xf32>, vector<64x24xf32> -> vector<64x24xf32>
    %3 = vector.shape_cast %2 : vector<64x24xf32> to vector<8x8x24xf32>
    %4 = vector.extract_strided_slice %3 {offsets = [0, 0, 0], sizes = [8, 8, 8], strides = [1, 1, 1]} : vector<8x8x24xf32> to vector<8x8x8xf32>
    %5 = vector.extract_strided_slice %3 {offsets = [0, 0, 8], sizes = [8, 8, 8], strides = [1, 1, 1]} : vector<8x8x24xf32> to vector<8x8x8xf32>
    %6 = vector.extract_strided_slice %3 {offsets = [0, 0, 16], sizes = [8, 8, 8], strides = [1, 1, 1]} : vector<8x8x24xf32> to vector<8x8x8xf32>
    "tpu.trace_start"() <{level = 10 : i32, message = "bqd,bkd->bqk"}> : () -> ()
    %cst_3 = arith.constant dense<0.000000e+00> : vector<8x8x8xf32>
    %7 = tpu.matmul %4, %5, %cst_3 {dimension_numbers = #tpu.dot_dimension_numbers<[2], [2], [1], [1], [0, 0, 0, 1, 1, 1], [0], [0]>} : vector<8x8x8xf32>, vector<8x8x8xf32>, vector<8x8x8xf32> -> vector<8x8x8xf32>
    "tpu.trace_stop"() : () -> ()
    %cst_4 = arith.constant 0.176776692 : f32
    %8 = vector.broadcast %cst_4 : f32 to vector<8x8x8xf32>
    %9 = arith.mulf %7, %8 : vector<8x8x8xf32>
    %cst_5 = arith.constant dense<0xFF800000> : vector<8x8xf32>
    %10 = vector.multi_reduction <maximumf>, %9, %cst_5 [2] : vector<8x8x8xf32> to vector<8x8xf32>
    %11 = vector.shape_cast %10 : vector<8x8xf32> to vector<8x8x1xf32>
    %12 = vector.broadcast %11 : vector<8x8x1xf32> to vector<8x8x8xf32>
    %13 = arith.subf %9, %12 : vector<8x8x8xf32>
    %14 = math.exp %13 : vector<8x8x8xf32>
    %cst_6 = arith.constant dense<0.000000e+00> : vector<8x8xf32>
    %15 = vector.multi_reduction <add>, %14, %cst_6 [2] : vector<8x8x8xf32> to vector<8x8xf32>
    %16 = vector.shape_cast %15 : vector<8x8xf32> to vector<8x8x1xf32>
    %17 = tpu.reciprocal %16 : vector<8x8x1xf32> -> vector<8x8x1xf32>
    %18 = vector.broadcast %17 : vector<8x8x1xf32> to vector<8x8x8xf32>
    %19 = arith.mulf %14, %18 : vector<8x8x8xf32>
    "tpu.trace_start"() <{level = 10 : i32, message = "bqk,bkd->bqd"}> : () -> ()
    %cst_7 = arith.constant dense<0.000000e+00> : vector<8x8x8xf32>
    %20 = tpu.matmul %19, %6, %cst_7 {dimension_numbers = #tpu.dot_dimension_numbers<[2], [1], [1], [2], [0, 0, 0, 1, 1, 2], [0], [0]>} : vector<8x8x8xf32>, vector<8x8x8xf32>, vector<8x8x8xf32> -> vector<8x8x8xf32>
    "tpu.trace_stop"() : () -> ()
    %c0_8 = arith.constant 0 : index
    %c0_9 = arith.constant 0 : index
    %21 = vector.load %arg2[%c0_8, %c0_9] : memref<16x32xf32, #tpu.memory_space<vmem>>, vector<16x32xf32>
    %cst_10 = arith.constant 0.000000e+00 : f32
    %22 = vector.broadcast %cst_10 : f32 to vector<16x32xf32>
    %23 = vector.extract_strided_slice %20 {offsets = [0, 0, 0], sizes = [2, 8, 8], strides = [1, 1, 1]} : vector<8x8x8xf32> to vector<2x8x8xf32>
    %24 = vector.shape_cast %23 : vector<2x8x8xf32> to vector<16x8xf32>
    %c0_11 = arith.constant 0 : index
    %c0_12 = arith.constant 0 : index
    %25 = vector.load %arg4[%c0_11, %c0_12] : memref<32x32xf32, #tpu.memory_space<vmem>>, vector<8x32xf32>
    %cst_13 = arith.constant dense<0.000000e+00> : vector<16x32xf32>
    %26 = tpu.matmul %24, %25, %cst_13 {dimension_numbers = #tpu.dot_dimension_numbers<[1], [0], [0], [1], [0, 0, 1, 1], [], []>} : vector<16x8xf32>, vector<8x32xf32>, vector<16x32xf32> -> vector<16x32xf32>
    %27 = arith.addf %22, %26 : vector<16x32xf32>
    %28 = vector.extract_strided_slice %20 {offsets = [2, 0, 0], sizes = [2, 8, 8], strides = [1, 1, 1]} : vector<8x8x8xf32> to vector<2x8x8xf32>
    %29 = vector.shape_cast %28 : vector<2x8x8xf32> to vector<16x8xf32>
    %c8 = arith.constant 8 : index
    %c0_14 = arith.constant 0 : index
    %30 = vector.load %arg4[%c8, %c0_14] : memref<32x32xf32, #tpu.memory_space<vmem>>, vector<8x32xf32>
    %cst_15 = arith.constant dense<0.000000e+00> : vector<16x32xf32>
    %31 = tpu.matmul %29, %30, %cst_15 {dimension_numbers = #tpu.dot_dimension_numbers<[1], [0], [0], [1], [0, 0, 1, 1], [], []>} : vector<16x8xf32>, vector<8x32xf32>, vector<16x32xf32> -> vector<16x32xf32>
    %32 = arith.addf %27, %31 : vector<16x32xf32>
    %33 = vector.extract_strided_slice %20 {offsets = [4, 0, 0], sizes = [2, 8, 8], strides = [1, 1, 1]} : vector<8x8x8xf32> to vector<2x8x8xf32>
    %34 = vector.shape_cast %33 : vector<2x8x8xf32> to vector<16x8xf32>
    %c16 = arith.constant 16 : index
    %c0_16 = arith.constant 0 : index
    %35 = vector.load %arg4[%c16, %c0_16] : memref<32x32xf32, #tpu.memory_space<vmem>>, vector<8x32xf32>
    %cst_17 = arith.constant dense<0.000000e+00> : vector<16x32xf32>
    %36 = tpu.matmul %34, %35, %cst_17 {dimension_numbers = #tpu.dot_dimension_numbers<[1], [0], [0], [1], [0, 0, 1, 1], [], []>} : vector<16x8xf32>, vector<8x32xf32>, vector<16x32xf32> -> vector<16x32xf32>
    %37 = arith.addf %32, %36 : vector<16x32xf32>
    %38 = vector.extract_strided_slice %20 {offsets = [6, 0, 0], sizes = [2, 8, 8], strides = [1, 1, 1]} : vector<8x8x8xf32> to vector<2x8x8xf32>
    %39 = vector.shape_cast %38 : vector<2x8x8xf32> to vector<16x8xf32>
    %c24 = arith.constant 24 : index
    %c0_18 = arith.constant 0 : index
    %40 = vector.load %arg4[%c24, %c0_18] : memref<32x32xf32, #tpu.memory_space<vmem>>, vector<8x32xf32>
    %cst_19 = arith.constant dense<0.000000e+00> : vector<16x32xf32>
    %41 = tpu.matmul %39, %40, %cst_19 {dimension_numbers = #tpu.dot_dimension_numbers<[1], [0], [0], [1], [0, 0, 1, 1], [], []>} : vector<16x8xf32>, vector<8x32xf32>, vector<16x32xf32> -> vector<16x32xf32>
    %42 = arith.addf %37, %41 : vector<16x32xf32>
    %c0_20 = arith.constant 0 : index
    %c0_21 = arith.constant 0 : index
    %43 = vector.load %arg5[%c0_20, %c0_21] : memref<1x32xf32, #tpu.memory_space<vmem>>, vector<1x32xf32>
    %44 = vector.broadcast %43 : vector<1x32xf32> to vector<16x32xf32>
    %45 = arith.addf %42, %44 : vector<16x32xf32>
    %46 = arith.addf %45, %21 : vector<16x32xf32>
    %c0_22 = arith.constant 0 : index
    %c0_23 = arith.constant 0 : index
    %47 = vector.load %arg6[%c0_22, %c0_23] : memref<32x128xf32, #tpu.memory_space<vmem>>, vector<32x128xf32>
    %cst_24 = arith.constant dense<0.000000e+00> : vector<16x128xf32>
    %48 = tpu.matmul %46, %47, %cst_24 {dimension_numbers = #tpu.dot_dimension_numbers<[1], [0], [0], [1], [0, 0, 1, 1], [], []>} : vector<16x32xf32>, vector<32x128xf32>, vector<16x128xf32> -> vector<16x128xf32>
    %c0_25 = arith.constant 0 : index
    %c0_26 = arith.constant 0 : index
    %49 = vector.load %arg7[%c0_25, %c0_26] : memref<1x128xf32, #tpu.memory_space<vmem>>, vector<1x128xf32>
    %50 = vector.broadcast %49 : vector<1x128xf32> to vector<16x128xf32>
    %51 = arith.addf %48, %50 : vector<16x128xf32>
    %cst_27 = arith.constant 0.000000e+00 : f32
    %52 = vector.broadcast %cst_27 : f32 to vector<16x128xf32>
    %53 = arith.maximumf %51, %52 : vector<16x128xf32>
    %c0_28 = arith.constant 0 : index
    %c0_29 = arith.constant 0 : index
    %54 = vector.load %arg8[%c0_28, %c0_29] : memref<128x32xf32, #tpu.memory_space<vmem>>, vector<128x32xf32>
    %cst_30 = arith.constant dense<0.000000e+00> : vector<16x32xf32>
    %55 = tpu.matmul %53, %54, %cst_30 {dimension_numbers = #tpu.dot_dimension_numbers<[1], [0], [0], [1], [0, 0, 1, 1], [], []>} : vector<16x128xf32>, vector<128x32xf32>, vector<16x32xf32> -> vector<16x32xf32>
    %c0_31 = arith.constant 0 : index
    %c0_32 = arith.constant 0 : index
    %56 = vector.load %arg9[%c0_31, %c0_32] : memref<1x32xf32, #tpu.memory_space<vmem>>, vector<1x32xf32>
    %57 = vector.broadcast %56 : vector<1x32xf32> to vector<16x32xf32>
    %58 = arith.addf %55, %57 : vector<16x32xf32>
    %cst_33 = arith.constant 0.000000e+00 : f32
    %59 = vector.broadcast %cst_33 : f32 to vector<16x32xf32>
    %60 = arith.maximumf %58, %59 : vector<16x32xf32>
    %c0_34 = arith.constant 0 : index
    %c0_35 = arith.constant 0 : index
    %61 = vector.load %arg10[%c0_34, %c0_35] : memref<16x32xf32, #tpu.memory_space<vmem>>, vector<16x32xf32>
    tpu.vector_store %arg10[%c0_34, %c0_35], %60 {strides = array<i32>} : memref<16x32xf32, #tpu.memory_space<vmem>>, vector<16x32xf32>,
    return
  }
  func.func @transform_0(%arg0: i32) -> (i32, i32) {
    %c0_i32 = arith.constant 0 : i32
    %c0_i32_0 = arith.constant 0 : i32
    %c0_i32_1 = arith.constant 0 : i32
    return %c0_i32, %c0_i32_0 : i32, i32
  }
  func.func @transform_1(%arg0: i32) -> (i32, i32) {
    %c0_i32 = arith.constant 0 : i32
    %c0_i32_0 = arith.constant 0 : i32
    %c0_i32_1 = arith.constant 0 : i32
    return %c0_i32, %c0_i32_0 : i32, i32
  }
  func.func @transform_2(%arg0: i32) -> (i32, i32) {
    %c0_i32 = arith.constant 0 : i32
    %c0_i32_0 = arith.constant 0 : i32
    %c0_i32_1 = arith.constant 0 : i32
    return %c0_i32, %c0_i32_0 : i32, i32
  }
  func.func @transform_3(%arg0: i32) -> (i32, i32) {
    %c0_i32 = arith.constant 0 : i32
    %c0_i32_0 = arith.constant 0 : i32
    %c0_i32_1 = arith.constant 0 : i32
    return %c0_i32, %c0_i32_0 : i32, i32
  }
  func.func @transform_4(%arg0: i32) -> (i32, i32) {
    %c0_i32 = arith.constant 0 : i32
    %c0_i32_0 = arith.constant 0 : i32
    %c0_i32_1 = arith.constant 0 : i32
    return %c0_i32, %c0_i32_0 : i32, i32
  }
  func.func @transform_5(%arg0: i32) -> (i32, i32) {
    %c0_i32 = arith.constant 0 : i32
    %c0_i32_0 = arith.constant 0 : i32
    %c0_i32_1 = arith.constant 0 : i32
    return %c0_i32, %c0_i32_0 : i32, i32
  }
  func.func @transform_6(%arg0: i32) -> (i32, i32) {
    %c0_i32 = arith.constant 0 : i32
    %c0_i32_0 = arith.constant 0 : i32
    %c0_i32_1 = arith.constant 0 : i32
    return %c0_i32, %c0_i32_0 : i32, i32
  }
  func.func @transform_7(%arg0: i32) -> (i32, i32) {
    %c0_i32 = arith.constant 0 : i32
    %c0_i32_0 = arith.constant 0 : i32
    %c0_i32_1 = arith.constant 0 : i32
    return %c0_i32, %c0_i32_0 : i32, i32
  }
  func.func @transform_8(%arg0: i32) -> (i32, i32) {
    %c0_i32 = arith.constant 0 : i32
    %c0_i32_0 = arith.constant 0 : i32
    %c0_i32_1 = arith.constant 0 : i32
    return %c0_i32, %c0_i32_0 : i32, i32
  }
  func.func @transform_9(%arg0: i32) -> (i32, i32) {
    %c0_i32 = arith.constant 0 : i32
    %c0_i32_0 = arith.constant 0 : i32
    %c0_i32_1 = arith.constant 0 : i32
    return %c0_i32, %c0_i32_0 : i32, i32
  }
}

</mosaic_0001>

<llo_original>
// kernel: tpu_custom_call.1
$region0: #{tpu_custom_call.1}
  #allocation0 [shape = 'u32[]', space=smem, size = 0x4, offset = 0x4, fixed_abs, tag = 'smem constant byte address 0x4 - core index']
  #allocation1 [shape = 'u32[72,128]{1,0:T(1,128)}', space=vmem, size = 0x9000, scoped, tag = 'internal scratch']
  %s0 = inlined_call_operand.vmem [shape: f32[64,8], index: 0, kind: input, shape index: {}]
  %s1 = inlined_call_operand.vmem [shape: f32[16,32], index: 1, kind: input, shape index: {}]
  %s2 = inlined_call_operand.vmem [shape: f32[8,24], index: 2, kind: input, shape index: {}]
  %s3 = inlined_call_operand.vmem [shape: f32[32,32], index: 3, kind: input, shape index: {}]
  %s4 = inlined_call_operand.vmem [shape: f32[1,32], index: 4, kind: input, shape index: {}]
  %s5 = inlined_call_operand.vmem [shape: f32[32,128], index: 5, kind: input, shape index: {}]
  %s6 = inlined_call_operand.vmem [shape: f32[1,128], index: 6, kind: input, shape index: {}]
  %s7 = inlined_call_operand.vmem [shape: f32[128,32], index: 7, kind: input, shape index: {}]
  %s8 = inlined_call_operand.vmem [shape: f32[1,32], index: 8, kind: input, shape index: {}]
  %s9 = inlined_call_operand.hbm [shape: f32[16,32], index: 9, kind: output, shape index: {}]
  %s10 = sld [smem:[#allocation0]]
  $region46: #{tpu_custom_call.1} parent=0
    _
  %s12 = ssub.s32 1, %s10
  %s13 = scalar_select 0, %s12, %s10
  $region1: #{tpu_custom_call.1} parent=0
    #allocation2 [shape = 'u8[8192]{0}', space=vmem, size = 0x2000, scoped, tag = 'output window, operand 0, single buffered']
    #allocation3 [shape = 's32[1]{0}', space=sflag, size = 0x4, scoped, tag = 'scoped memory for tpu_custom_call.1']
    %14 = vsyncpa [#allocation3], 0
    // Predicated region
    $region2: #{tpu_custom_call.1} parent=1 // pred_check
      _
    $region3: #{tpu_custom_call.1} parent=1 // pred_check_branch
      %16 = sbr.rel (0) target = $region5
    $region4: #{tpu_custom_call.1} parent=1 // pred_region
      _
    $region5: #{tpu_custom_call.1} parent=1 // pred_fallthru
      _
    // Predicated region
    $region6: #{tpu_custom_call.1} parent=1 // pred_check
      _
    $region7: #{tpu_custom_call.1} parent=1 // pred_check_branch
      %18 = sbr.rel (0) target = $region9
    $region8: #{tpu_custom_call.1} parent=1 // pred_region
      _
    $region9: #{tpu_custom_call.1} parent=1 // pred_fallthru
      _
    // Predicated region
    $region10: #{tpu_custom_call.1} parent=1 // pred_check
      _
    $region11: #{tpu_custom_call.1} parent=1 // pred_check_branch
      %20 = sbr.rel (0) target = $region13
    $region12: #{tpu_custom_call.1} parent=1 // pred_region
      _
    $region13: #{tpu_custom_call.1} parent=1 // pred_fallthru
      _
    // Predicated region
    $region14: #{tpu_custom_call.1} parent=1 // pred_check
      _
    $region15: #{tpu_custom_call.1} parent=1 // pred_check_branch
      %22 = sbr.rel (0) target = $region17
    $region16: #{tpu_custom_call.1} parent=1 // pred_region
      _
    $region17: #{tpu_custom_call.1} parent=1 // pred_fallthru
      _
    // Predicated region
    $region18: #{tpu_custom_call.1} parent=1 // pred_check
      _
    $region19: #{tpu_custom_call.1} parent=1 // pred_check_branch
      %24 = sbr.rel (0) target = $region21
    $region20: #{tpu_custom_call.1} parent=1 // pred_region
      _
    $region21: #{tpu_custom_call.1} parent=1 // pred_fallthru
      _
    // Predicated region
    $region22: #{tpu_custom_call.1} parent=1 // pred_check
      _
    $region23: #{tpu_custom_call.1} parent=1 // pred_check_branch
      %26 = sbr.rel (0) target = $region25
    $region24: #{tpu_custom_call.1} parent=1 // pred_region
      _
    $region25: #{tpu_custom_call.1} parent=1 // pred_fallthru
      _
    // Predicated region
    $region26: #{tpu_custom_call.1} parent=1 // pred_check
      _
    $region27: #{tpu_custom_call.1} parent=1 // pred_check_branch
      %28 = sbr.rel (0) target = $region29
    $region28: #{tpu_custom_call.1} parent=1 // pred_region
      _
    $region29: #{tpu_custom_call.1} parent=1 // pred_fallthru
      _
    // Predicated region
    $region30: #{tpu_custom_call.1} parent=1 // pred_check
      _
    $region31: #{tpu_custom_call.1} parent=1 // pred_check_branch
      %30 = sbr.rel (0) target = $region33
    $region32: #{tpu_custom_call.1} parent=1 // pred_region
      _
    $region33: #{tpu_custom_call.1} parent=1 // pred_fallthru
      _
    // Predicated region
    $region34: #{tpu_custom_call.1} parent=1 // pred_check
      _
    $region35: #{tpu_custom_call.1} parent=1 // pred_check_branch
      %32 = sbr.rel (0) target = $region37
    $region36: #{tpu_custom_call.1} parent=1 // pred_region
      _
    $region37: #{tpu_custom_call.1} parent=1 // pred_fallthru
      _
    %v33 = vld [vmem:[%s0] sm:$0xff]
    %v34 = vld [vmem:[%s0 + $0x8] sm:$0xff]
    %v35 = vld [vmem:[%s0 + $0x10] sm:$0xff]
    %v36 = vld [vmem:[%s0 + $0x18] sm:$0xff]
    %v37 = vld [vmem:[%s0 + $0x20] sm:$0xff]
    %v38 = vld [vmem:[%s0 + $0x28] sm:$0xff]
    %v39 = vld [vmem:[%s0 + $0x30] sm:$0xff]
    %v40 = vld [vmem:[%s0 + $0x38] sm:$0xff]
    %v41 = vld [vmem:[%s2] sm:$0xff]
    %vm42 = vcmask 64512
    %v44 = vsel %vm42, %v33, 0
    %v47 = vsel %vm42, %v34, 0
    %v50 = vsel %vm42, %v35, 0
    %v53 = vsel %vm42, %v36, 0
    %v56 = vsel %vm42, %v37, 0
    %v59 = vsel %vm42, %v38, 0
    %v62 = vsel %vm42, %v39, 0
    %v65 = vsel %vm42, %v40, 0
    %67 = vmatpush.msra.mxu0 0.0
    %68 = vmatpush.msra.mxu0 0.0
    %69 = vmatpush.msra.mxu0 0.0
    %70 = vmatpush.msra.mxu0 0.0
    %71 = vmatpush.msra.mxu0 0.0
    %72 = vmatpush.msra.mxu0 0.0
    %73 = vmatpush.msra.mxu0 0.0
    %74 = vmatpush.msra.mxu0 0.0
    %75 = vmatpush.msra.mxu0 0.0
    %76 = vmatpush.msra.mxu0 0.0
    %77 = vmatpush.msra.mxu0 0.0
    %78 = vmatpush.msra.mxu0 0.0
    %79 = vmatpush.msra.mxu0 0.0
    %80 = vmatpush.msra.mxu0 0.0
    %81 = vmatpush.msra.mxu0 0.0
    %82 = vmatpush.msra.mxu0 %v41
    %83 = vmatmul.f32.gmra.mxu0 %v44
    %v84 = vpop.f32.mrf.mxu0
    %v85 = vadd.f32 0.0, %v84
    %86 = vmatmul.f32.gmra.mxu0 %v47
    %v87 = vpop.f32.mrf.mxu0
    %v88 = vadd.f32 0.0, %v87
    %89 = vmatmul.f32.gmra.mxu0 %v50
    %v90 = vpop.f32.mrf.mxu0
    %v91 = vadd.f32 0.0, %v90
    %92 = vmatmul.f32.gmra.mxu0 %v53
    %v93 = vpop.f32.mrf.mxu0
    %v94 = vadd.f32 0.0, %v93
    %95 = vmatmul.f32.gmra.mxu0 %v56
    %v96 = vpop.f32.mrf.mxu0
    %v97 = vadd.f32 0.0, %v96
    %98 = vmatmul.f32.gmra.mxu0 %v59
    %v99 = vpop.f32.mrf.mxu0
    %v100 = vadd.f32 0.0, %v99
    %101 = vmatmul.f32.gmra.mxu0 %v62
    %v102 = vpop.f32.mrf.mxu0
    %v103 = vadd.f32 0.0, %v102
    %104 = vmatmul.f32.gmra.mxu0 %v65
    %v105 = vpop.f32.mrf.mxu0
    %v106 = vadd.f32 0.0, %v105
    %107 = vdwg.mxu0
    %109 = vrot.lane.b32.xlu0 %v85, 120
    %v110 = vpop.permute.xlu0 %109
    %v111 = vsel %vm42, %v85, 0
    %v113 = vsel %vm42, %v110, 0
    %115 = vmatpush.xpose.msra.mxu0 0.0
    %116 = vmatpush.xpose.msra.mxu0 0.0
    %117 = vmatpush.xpose.msra.mxu0 0.0
    %118 = vmatpush.xpose.msra.mxu0 0.0
    %119 = vmatpush.xpose.msra.mxu0 0.0
    %120 = vmatpush.xpose.msra.mxu0 0.0
    %121 = vmatpush.xpose.msra.mxu0 0.0
    %122 = vmatpush.xpose.msra.mxu0 0.0
    %123 = vmatpush.xpose.msra.mxu0 0.0
    %124 = vmatpush.xpose.msra.mxu0 0.0
    %125 = vmatpush.xpose.msra.mxu0 0.0
    %126 = vmatpush.xpose.msra.mxu0 0.0
    %127 = vmatpush.xpose.msra.mxu0 0.0
    %128 = vmatpush.xpose.msra.mxu0 0.0
    %129 = vmatpush.xpose.msra.mxu0 0.0
    %130 = vmatpush.xpose.msra.mxu0 %v113
    %131 = vmatmul.f32.gmra.mxu0 %v111
    %v132 = vpop.f32.mrf.mxu0
    %v133 = vadd.f32 0.0, %v132
    %134 = vdwg.mxu0
    %136 = vrot.lane.b32.xlu0 %v88, 120
    %v137 = vpop.permute.xlu0 %136
    %v138 = vsel %vm42, %v88, 0
    %v140 = vsel %vm42, %v137, 0
    %142 = vmatpush.xpose.msra.mxu0 0.0
    %143 = vmatpush.xpose.msra.mxu0 0.0
    %144 = vmatpush.xpose.msra.mxu0 0.0
    %145 = vmatpush.xpose.msra.mxu0 0.0
    %146 = vmatpush.xpose.msra.mxu0 0.0
    %147 = vmatpush.xpose.msra.mxu0 0.0
    %148 = vmatpush.xpose.msra.mxu0 0.0
    %149 = vmatpush.xpose.msra.mxu0 0.0
    %150 = vmatpush.xpose.msra.mxu0 0.0
    %151 = vmatpush.xpose.msra.mxu0 0.0
    %152 = vmatpush.xpose.msra.mxu0 0.0
    %153 = vmatpush.xpose.msra.mxu0 0.0
    %154 = vmatpush.xpose.msra.mxu0 0.0
    %155 = vmatpush.xpose.msra.mxu0 0.0
    %156 = vmatpush.xpose.msra.mxu0 0.0
    %157 = vmatpush.xpose.msra.mxu0 %v140
    %158 = vmatmul.f32.gmra.mxu0 %v138
    %v159 = vpop.f32.mrf.mxu0
    %v160 = vadd.f32 0.0, %v159
    %161 = vdwg.mxu0
    %163 = vrot.lane.b32.xlu0 %v91, 120
    %v164 = vpop.permute.xlu0 %163
    %v165 = vsel %vm42, %v91, 0
    %v167 = vsel %vm42, %v164, 0
    %169 = vmatpush.xpose.msra.mxu0 0.0
    %170 = vmatpush.xpose.msra.mxu0 0.0
    %171 = vmatpush.xpose.msra.mxu0 0.0
    %172 = vmatpush.xpose.msra.mxu0 0.0
    %173 = vmatpush.xpose.msra.mxu0 0.0
    %174 = vmatpush.xpose.msra.mxu0 0.0
    %175 = vmatpush.xpose.msra.mxu0 0.0
    %176 = vmatpush.xpose.msra.mxu0 0.0
    %177 = vmatpush.xpose.msra.mxu0 0.0
    %178 = vmatpush.xpose.msra.mxu0 0.0
    %179 = vmatpush.xpose.msra.mxu0 0.0
    %180 = vmatpush.xpose.msra.mxu0 0.0
    %181 = vmatpush.xpose.msra.mxu0 0.0
    %182 = vmatpush.xpose.msra.mxu0 0.0
    %183 = vmatpush.xpose.msra.mxu0 0.0
    %184 = vmatpush.xpose.msra.mxu0 %v167
    %185 = vmatmul.f32.gmra.mxu0 %v165
    %v186 = vpop.f32.mrf.mxu0
    %v187 = vadd.f32 0.0, %v186
    %188 = vdwg.mxu0
    %190 = vrot.lane.b32.xlu0 %v94, 120
    %v191 = vpop.permute.xlu0 %190
    %v192 = vsel %vm42, %v94, 0
    %v194 = vsel %vm42, %v191, 0
    %196 = vmatpush.xpose.msra.mxu0 0.0
    %197 = vmatpush.xpose.msra.mxu0 0.0
    %198 = vmatpush.xpose.msra.mxu0 0.0
    %199 = vmatpush.xpose.msra.mxu0 0.0
    %200 = vmatpush.xpose.msra.mxu0 0.0
    %201 = vmatpush.xpose.msra.mxu0 0.0
    %202 = vmatpush.xpose.msra.mxu0 0.0
    %203 = vmatpush.xpose.msra.mxu0 0.0
    %204 = vmatpush.xpose.msra.mxu0 0.0
    %205 = vmatpush.xpose.msra.mxu0 0.0
    %206 = vmatpush.xpose.msra.mxu0 0.0
    %207 = vmatpush.xpose.msra.mxu0 0.0
    %208 = vmatpush.xpose.msra.mxu0 0.0
    %209 = vmatpush.xpose.msra.mxu0 0.0
    %210 = vmatpush.xpose.msra.mxu0 0.0
    %211 = vmatpush.xpose.msra.mxu0 %v194
    %212 = vmatmul.f32.gmra.mxu0 %v192
    %v213 = vpop.f32.mrf.mxu0
    %v214 = vadd.f32 0.0, %v213
    %215 = vdwg.mxu0
    %217 = vrot.lane.b32.xlu0 %v97, 120
    %v218 = vpop.permute.xlu0 %217
    %v219 = vsel %vm42, %v97, 0
    %v221 = vsel %vm42, %v218, 0
    %223 = vmatpush.xpose.msra.mxu0 0.0
    %224 = vmatpush.xpose.msra.mxu0 0.0
    %225 = vmatpush.xpose.msra.mxu0 0.0
    %226 = vmatpush.xpose.msra.mxu0 0.0
    %227 = vmatpush.xpose.msra.mxu0 0.0
    %228 = vmatpush.xpose.msra.mxu0 0.0
    %229 = vmatpush.xpose.msra.mxu0 0.0
    %230 = vmatpush.xpose.msra.mxu0 0.0
    %231 = vmatpush.xpose.msra.mxu0 0.0
    %232 = vmatpush.xpose.msra.mxu0 0.0
    %233 = vmatpush.xpose.msra.mxu0 0.0
    %234 = vmatpush.xpose.msra.mxu0 0.0
    %235 = vmatpush.xpose.msra.mxu0 0.0
    %236 = vmatpush.xpose.msra.mxu0 0.0
    %237 = vmatpush.xpose.msra.mxu0 0.0
    %238 = vmatpush.xpose.msra.mxu0 %v221
    %239 = vmatmul.f32.gmra.mxu0 %v219
    %v240 = vpop.f32.mrf.mxu0
    %v241 = vadd.f32 0.0, %v240
    %242 = vdwg.mxu0
    %244 = vrot.lane.b32.xlu0 %v100, 120
    %v245 = vpop.permute.xlu0 %244
    %v246 = vsel %vm42, %v100, 0
    %v248 = vsel %vm42, %v245, 0
    %250 = vmatpush.xpose.msra.mxu0 0.0
    %251 = vmatpush.xpose.msra.mxu0 0.0
    %252 = vmatpush.xpose.msra.mxu0 0.0
    %253 = vmatpush.xpose.msra.mxu0 0.0
    %254 = vmatpush.xpose.msra.mxu0 0.0
    %255 = vmatpush.xpose.msra.mxu0 0.0
    %256 = vmatpush.xpose.msra.mxu0 0.0
    %257 = vmatpush.xpose.msra.mxu0 0.0
    %258 = vmatpush.xpose.msra.mxu0 0.0
    %259 = vmatpush.xpose.msra.mxu0 0.0
    %260 = vmatpush.xpose.msra.mxu0 0.0
    %261 = vmatpush.xpose.msra.mxu0 0.0
    %262 = vmatpush.xpose.msra.mxu0 0.0
    %263 = vmatpush.xpose.msra.mxu0 0.0
    %264 = vmatpush.xpose.msra.mxu0 0.0
    %265 = vmatpush.xpose.msra.mxu0 %v248
    %266 = vmatmul.f32.gmra.mxu0 %v246
    %v267 = vpop.f32.mrf.mxu0
    %v268 = vadd.f32 0.0, %v267
    %269 = vdwg.mxu0
    %271 = vrot.lane.b32.xlu0 %v103, 120
    %v272 = vpop.permute.xlu0 %271
    %v273 = vsel %vm42, %v103, 0
    %v275 = vsel %vm42, %v272, 0
    %277 = vmatpush.xpose.msra.mxu0 0.0
    %278 = vmatpush.xpose.msra.mxu0 0.0
    %279 = vmatpush.xpose.msra.mxu0 0.0
    %280 = vmatpush.xpose.msra.mxu0 0.0
    %281 = vmatpush.xpose.msra.mxu0 0.0
    %282 = vmatpush.xpose.msra.mxu0 0.0
    %283 = vmatpush.xpose.msra.mxu0 0.0
    %284 = vmatpush.xpose.msra.mxu0 0.0
    %285 = vmatpush.xpose.msra.mxu0 0.0
    %286 = vmatpush.xpose.msra.mxu0 0.0
    %287 = vmatpush.xpose.msra.mxu0 0.0
    %288 = vmatpush.xpose.msra.mxu0 0.0
    %289 = vmatpush.xpose.msra.mxu0 0.0
    %290 = vmatpush.xpose.msra.mxu0 0.0
    %291 = vmatpush.xpose.msra.mxu0 0.0
    %292 = vmatpush.xpose.msra.mxu0 %v275
    %293 = vmatmul.f32.gmra.mxu0 %v273
    %v294 = vpop.f32.mrf.mxu0
    %v295 = vadd.f32 0.0, %v294
    %296 = vdwg.mxu0
    %298 = vrot.lane.b32.xlu0 %v106, 120
    %v299 = vpop.permute.xlu0 %298
    %v300 = vsel %vm42, %v106, 0
    %v302 = vsel %vm42, %v299, 0
    %304 = vmatpush.xpose.msra.mxu0 0.0
    %305 = vmatpush.xpose.msra.mxu0 0.0
    %306 = vmatpush.xpose.msra.mxu0 0.0
    %307 = vmatpush.xpose.msra.mxu0 0.0
    %308 = vmatpush.xpose.msra.mxu0 0.0
    %309 = vmatpush.xpose.msra.mxu0 0.0
    %310 = vmatpush.xpose.msra.mxu0 0.0
    %311 = vmatpush.xpose.msra.mxu0 0.0
    %312 = vmatpush.xpose.msra.mxu0 0.0
    %313 = vmatpush.xpose.msra.mxu0 0.0
    %314 = vmatpush.xpose.msra.mxu0 0.0
    %315 = vmatpush.xpose.msra.mxu0 0.0
    %316 = vmatpush.xpose.msra.mxu0 0.0
    %317 = vmatpush.xpose.msra.mxu0 0.0
    %318 = vmatpush.xpose.msra.mxu0 0.0
    %319 = vmatpush.xpose.msra.mxu0 %v302
    %320 = vmatmul.f32.gmra.mxu0 %v300
    %v321 = vpop.f32.mrf.mxu0
    %v322 = vadd.f32 0.0, %v321
    %323 = vdwg.mxu0
    %v324 = vmul.f32 %v133, 0.17677669
    %v325 = vmul.f32 %v160, 0.17677669
    %v326 = vmul.f32 %v187, 0.17677669
    %v327 = vmul.f32 %v214, 0.17677669
    %v328 = vmul.f32 %v241, 0.17677669
    %v329 = vmul.f32 %v268, 0.17677669
    %v330 = vmul.f32 %v295, 0.17677669
    %v331 = vmul.f32 %v322, 0.17677669
    %v332 = vsel %vm42, %v324, -inf
    %333 = vmax.xlane.f32.xlu0 %v332
    %v334 = vpop.xlane.xlu0 %333
    %v335 = vsel %vm42, %v325, -inf
    %336 = vmax.xlane.f32.xlu0 %v335
    %v337 = vpop.xlane.xlu0 %336
    %v338 = vsel %vm42, %v326, -inf
    %339 = vmax.xlane.f32.xlu0 %v338
    %v340 = vpop.xlane.xlu0 %339
    %v341 = vsel %vm42, %v327, -inf
    %342 = vmax.xlane.f32.xlu0 %v341
    %v343 = vpop.xlane.xlu0 %342
    %v344 = vsel %vm42, %v328, -inf
    %345 = vmax.xlane.f32.xlu0 %v344
    %v346 = vpop.xlane.xlu0 %345
    %v347 = vsel %vm42, %v329, -inf
    %348 = vmax.xlane.f32.xlu0 %v347
    %v349 = vpop.xlane.xlu0 %348
    %v350 = vsel %vm42, %v330, -inf
    %351 = vmax.xlane.f32.xlu0 %v350
    %v352 = vpop.xlane.xlu0 %351
    %v353 = vsel %vm42, %v331, -inf
    %354 = vmax.xlane.f32.xlu0 %v353
    %v355 = vpop.xlane.xlu0 %354
    %v356 = vsub.f32 %v324, %v334
    %v357 = vsub.f32 %v325, %v337
    %v358 = vsub.f32 %v326, %v340
    %v359 = vsub.f32 %v327, %v343
    %v360 = vsub.f32 %v328, %v346
    %v361 = vsub.f32 %v329, %v349
    %v362 = vsub.f32 %v330, %v352
    %v363 = vsub.f32 %v331, %v355
    %v364 = vmul.f32 %v356, 1.442695
    %v365 = vpow.pop %v364
    %v366 = vmul.f32 %v357, 1.442695
    %v367 = vpow.pop %v366
    %v368 = vmul.f32 %v358, 1.442695
    %v369 = vpow.pop %v368
    %v370 = vmul.f32 %v359, 1.442695
    %v371 = vpow.pop %v370
    %v372 = vmul.f32 %v360, 1.442695
    %v373 = vpow.pop %v372
    %v374 = vmul.f32 %v361, 1.442695
    %v375 = vpow.pop %v374
    %v376 = vmul.f32 %v362, 1.442695
    %v377 = vpow.pop %v376
    %v378 = vmul.f32 %v363, 1.442695
    %v379 = vpow.pop %v378
    %v380 = vsel %vm42, %v365, 0.0
    %381 = vadd.xlane.f32.xlu0 %v380
    %v382 = vpop.xlane.xlu0 %381
    %v383 = vsel %vm42, %v367, 0.0
    %384 = vadd.xlane.f32.xlu0 %v383
    %v385 = vpop.xlane.xlu0 %384
    %v386 = vsel %vm42, %v369, 0.0
    %387 = vadd.xlane.f32.xlu0 %v386
    %v388 = vpop.xlane.xlu0 %387
    %v389 = vsel %vm42, %v371, 0.0
    %390 = vadd.xlane.f32.xlu0 %v389
    %v391 = vpop.xlane.xlu0 %390
    %v392 = vsel %vm42, %v373, 0.0
    %393 = vadd.xlane.f32.xlu0 %v392
    %v394 = vpop.xlane.xlu0 %393
    %v395 = vsel %vm42, %v375, 0.0
    %396 = vadd.xlane.f32.xlu0 %v395
    %v397 = vpop.xlane.xlu0 %396
    %v398 = vsel %vm42, %v377, 0.0
    %399 = vadd.xlane.f32.xlu0 %v398
    %v400 = vpop.xlane.xlu0 %399
    %v401 = vsel %vm42, %v379, 0.0
    %402 = vadd.xlane.f32.xlu0 %v401
    %v403 = vpop.xlane.xlu0 %402
    %v404 = vrcp.pop %v382
    %v405 = vmul.f32 %v382, %v404
    %v406 = vsub.f32 1.0, %v405
    %v407 = vmul.f32 %v404, %v406
    %v408 = vadd.f32 %v404, %v407
    %vm409 = vweird.f32 %v382
    %vm410 = vweird.f32 %v404
    %vm411 = vmor %vm409, %vm410
    %v412 = vsel %vm411, %v404, %v408
    %v413 = vand.u32 2147483647, %v382
    %vm414 = vcmp.eq.f32.partialorder %v413, 8.507059e+37
    %v415 = vand.u32 %v382, 2147483648
    %v416 = vor.u32 1.1754944e-38, %v415
    %v417 = vsel %vm414, %v416, %v412
    %v418 = vrcp.pop %v385
    %v419 = vmul.f32 %v385, %v418
    %v420 = vsub.f32 1.0, %v419
    %v421 = vmul.f32 %v418, %v420
    %v422 = vadd.f32 %v418, %v421
    %vm423 = vweird.f32 %v385
    %vm424 = vweird.f32 %v418
    %vm425 = vmor %vm423, %vm424
    %v426 = vsel %vm425, %v418, %v422
    %v427 = vand.u32 2147483647, %v385
    %vm428 = vcmp.eq.f32.partialorder %v427, 8.507059e+37
    %v429 = vand.u32 %v385, 2147483648
    %v430 = vor.u32 1.1754944e-38, %v429
    %v431 = vsel %vm428, %v430, %v426
    %v432 = vrcp.pop %v388
    %v433 = vmul.f32 %v388, %v432
    %v434 = vsub.f32 1.0, %v433
    %v435 = vmul.f32 %v432, %v434
    %v436 = vadd.f32 %v432, %v435
    %vm437 = vweird.f32 %v388
    %vm438 = vweird.f32 %v432
    %vm439 = vmor %vm437, %vm438
    %v440 = vsel %vm439, %v432, %v436
    %v441 = vand.u32 2147483647, %v388
    %vm442 = vcmp.eq.f32.partialorder %v441, 8.507059e+37
    %v443 = vand.u32 %v388, 2147483648
    %v444 = vor.u32 1.1754944e-38, %v443
    %v445 = vsel %vm442, %v444, %v440
    %v446 = vrcp.pop %v391
    %v447 = vmul.f32 %v391, %v446
    %v448 = vsub.f32 1.0, %v447
    %v449 = vmul.f32 %v446, %v448
    %v450 = vadd.f32 %v446, %v449
    %vm451 = vweird.f32 %v391
    %vm452 = vweird.f32 %v446
    %vm453 = vmor %vm451, %vm452
    %v454 = vsel %vm453, %v446, %v450
    %v455 = vand.u32 2147483647, %v391
    %vm456 = vcmp.eq.f32.partialorder %v455, 8.507059e+37
    %v457 = vand.u32 %v391, 2147483648
    %v458 = vor.u32 1.1754944e-38, %v457
    %v459 = vsel %vm456, %v458, %v454
    %v460 = vrcp.pop %v394
    %v461 = vmul.f32 %v394, %v460
    %v462 = vsub.f32 1.0, %v461
    %v463 = vmul.f32 %v460, %v462
    %v464 = vadd.f32 %v460, %v463
    %vm465 = vweird.f32 %v394
    %vm466 = vweird.f32 %v460
    %vm467 = vmor %vm465, %vm466
    %v468 = vsel %vm467, %v460, %v464
    %v469 = vand.u32 2147483647, %v394
    %vm470 = vcmp.eq.f32.partialorder %v469, 8.507059e+37
    %v471 = vand.u32 %v394, 2147483648
    %v472 = vor.u32 1.1754944e-38, %v471
    %v473 = vsel %vm470, %v472, %v468
    %v474 = vrcp.pop %v397
    %v475 = vmul.f32 %v397, %v474
    %v476 = vsub.f32 1.0, %v475
    %v477 = vmul.f32 %v474, %v476
    %v478 = vadd.f32 %v474, %v477
    %vm479 = vweird.f32 %v397
    %vm480 = vweird.f32 %v474
    %vm481 = vmor %vm479, %vm480
    %v482 = vsel %vm481, %v474, %v478
    %v483 = vand.u32 2147483647, %v397
    %vm484 = vcmp.eq.f32.partialorder %v483, 8.507059e+37
    %v485 = vand.u32 %v397, 2147483648
    %v486 = vor.u32 1.1754944e-38, %v485
    %v487 = vsel %vm484, %v486, %v482
    %v488 = vrcp.pop %v400
    %v489 = vmul.f32 %v400, %v488
    %v490 = vsub.f32 1.0, %v489
    %v491 = vmul.f32 %v488, %v490
    %v492 = vadd.f32 %v488, %v491
    %vm493 = vweird.f32 %v400
    %vm494 = vweird.f32 %v488
    %vm495 = vmor %vm493, %vm494
    %v496 = vsel %vm495, %v488, %v492
    %v497 = vand.u32 2147483647, %v400
    %vm498 = vcmp.eq.f32.partialorder %v497, 8.507059e+37
    %v499 = vand.u32 %v400, 2147483648
    %v500 = vor.u32 1.1754944e-38, %v499
    %v501 = vsel %vm498, %v500, %v496
    %v502 = vrcp.pop %v403
    %v503 = vmul.f32 %v403, %v502
    %v504 = vsub.f32 1.0, %v503
    %v505 = vmul.f32 %v502, %v504
    %v506 = vadd.f32 %v502, %v505
    %vm507 = vweird.f32 %v403
    %vm508 = vweird.f32 %v502
    %vm509 = vmor %vm507, %vm508
    %v510 = vsel %vm509, %v502, %v506
    %v511 = vand.u32 2147483647, %v403
    %vm512 = vcmp.eq.f32.partialorder %v511, 8.507059e+37
    %v513 = vand.u32 %v403, 2147483648
    %v514 = vor.u32 1.1754944e-38, %v513
    %v515 = vsel %vm512, %v514, %v510
    %v516 = vmul.f32 %v365, %v417
    %v517 = vmul.f32 %v367, %v431
    %v518 = vmul.f32 %v369, %v445
    %v519 = vmul.f32 %v371, %v459
    %v520 = vmul.f32 %v373, %v473
    %v521 = vmul.f32 %v375, %v487
    %v522 = vmul.f32 %v377, %v501
    %v523 = vmul.f32 %v379, %v515
    %524 = vrot.lane.b32.xlu0 %v85, 112
    %v525 = vpop.permute.xlu0 %524
    %v528 = vsel %vm42, %v516, 0
    %530 = vmatpush.msra.mxu0 0.0
    %531 = vmatpush.msra.mxu0 0.0
    %532 = vmatpush.msra.mxu0 0.0
    %533 = vmatpush.msra.mxu0 0.0
    %534 = vmatpush.msra.mxu0 0.0
    %535 = vmatpush.msra.mxu0 0.0
    %536 = vmatpush.msra.mxu0 0.0
    %537 = vmatpush.msra.mxu0 0.0
    %538 = vmatpush.msra.mxu0 0.0
    %539 = vmatpush.msra.mxu0 0.0
    %540 = vmatpush.msra.mxu0 0.0
    %541 = vmatpush.msra.mxu0 0.0
    %542 = vmatpush.msra.mxu0 0.0
    %543 = vmatpush.msra.mxu0 0.0
    %544 = vmatpush.msra.mxu0 0.0
    %545 = vmatpush.msra.mxu0 %v525
    %546 = vmatmul.f32.gmra.mxu0 %v528
    %v547 = vpop.f32.mrf.mxu0
    %v548 = vadd.f32 0.0, %v547
    %549 = vdwg.mxu0
    %550 = vrot.lane.b32.xlu0 %v88, 112
    %v551 = vpop.permute.xlu0 %550
    %v554 = vsel %vm42, %v517, 0
    %556 = vmatpush.msra.mxu0 0.0
    %557 = vmatpush.msra.mxu0 0.0
    %558 = vmatpush.msra.mxu0 0.0
    %559 = vmatpush.msra.mxu0 0.0
    %560 = vmatpush.msra.mxu0 0.0
    %561 = vmatpush.msra.mxu0 0.0
    %562 = vmatpush.msra.mxu0 0.0
    %563 = vmatpush.msra.mxu0 0.0
    %564 = vmatpush.msra.mxu0 0.0
    %565 = vmatpush.msra.mxu0 0.0
    %566 = vmatpush.msra.mxu0 0.0
    %567 = vmatpush.msra.mxu0 0.0
    %568 = vmatpush.msra.mxu0 0.0
    %569 = vmatpush.msra.mxu0 0.0
    %570 = vmatpush.msra.mxu0 0.0
    %571 = vmatpush.msra.mxu0 %v551
    %572 = vmatmul.f32.gmra.mxu0 %v554
    %v573 = vpop.f32.mrf.mxu0
    %v574 = vadd.f32 0.0, %v573
    %575 = vdwg.mxu0
    %576 = vrot.lane.b32.xlu0 %v91, 112
    %v577 = vpop.permute.xlu0 %576
    %v580 = vsel %vm42, %v518, 0
    %582 = vmatpush.msra.mxu0 0.0
    %583 = vmatpush.msra.mxu0 0.0
    %584 = vmatpush.msra.mxu0 0.0
    %585 = vmatpush.msra.mxu0 0.0
    %586 = vmatpush.msra.mxu0 0.0
    %587 = vmatpush.msra.mxu0 0.0
    %588 = vmatpush.msra.mxu0 0.0
    %589 = vmatpush.msra.mxu0 0.0
    %590 = vmatpush.msra.mxu0 0.0
    %591 = vmatpush.msra.mxu0 0.0
    %592 = vmatpush.msra.mxu0 0.0
    %593 = vmatpush.msra.mxu0 0.0
    %594 = vmatpush.msra.mxu0 0.0
    %595 = vmatpush.msra.mxu0 0.0
    %596 = vmatpush.msra.mxu0 0.0
    %597 = vmatpush.msra.mxu0 %v577
    %598 = vmatmul.f32.gmra.mxu0 %v580
    %v599 = vpop.f32.mrf.mxu0
    %v600 = vadd.f32 0.0, %v599
    %601 = vdwg.mxu0
    %602 = vrot.lane.b32.xlu0 %v94, 112
    %v603 = vpop.permute.xlu0 %602
    %v606 = vsel %vm42, %v519, 0
    %608 = vmatpush.msra.mxu0 0.0
    %609 = vmatpush.msra.mxu0 0.0
    %610 = vmatpush.msra.mxu0 0.0
    %611 = vmatpush.msra.mxu0 0.0
    %612 = vmatpush.msra.mxu0 0.0
    %613 = vmatpush.msra.mxu0 0.0
    %614 = vmatpush.msra.mxu0 0.0
    %615 = vmatpush.msra.mxu0 0.0
    %616 = vmatpush.msra.mxu0 0.0
    %617 = vmatpush.msra.mxu0 0.0
    %618 = vmatpush.msra.mxu0 0.0
    %619 = vmatpush.msra.mxu0 0.0
    %620 = vmatpush.msra.mxu0 0.0
    %621 = vmatpush.msra.mxu0 0.0
    %622 = vmatpush.msra.mxu0 0.0
    %623 = vmatpush.msra.mxu0 %v603
    %624 = vmatmul.f32.gmra.mxu0 %v606
    %v625 = vpop.f32.mrf.mxu0
    %v626 = vadd.f32 0.0, %v625
    %627 = vdwg.mxu0
    %628 = vrot.lane.b32.xlu0 %v97, 112
    %v629 = vpop.permute.xlu0 %628
    %v632 = vsel %vm42, %v520, 0
    %634 = vmatpush.msra.mxu0 0.0
    %635 = vmatpush.msra.mxu0 0.0
    %636 = vmatpush.msra.mxu0 0.0
    %637 = vmatpush.msra.mxu0 0.0
    %638 = vmatpush.msra.mxu0 0.0
    %639 = vmatpush.msra.mxu0 0.0
    %640 = vmatpush.msra.mxu0 0.0
    %641 = vmatpush.msra.mxu0 0.0
    %642 = vmatpush.msra.mxu0 0.0
    %643 = vmatpush.msra.mxu0 0.0
    %644 = vmatpush.msra.mxu0 0.0
    %645 = vmatpush.msra.mxu0 0.0
    %646 = vmatpush.msra.mxu0 0.0
    %647 = vmatpush.msra.mxu0 0.0
    %648 = vmatpush.msra.mxu0 0.0
    %649 = vmatpush.msra.mxu0 %v629
    %650 = vmatmul.f32.gmra.mxu0 %v632
    %v651 = vpop.f32.mrf.mxu0
    %v652 = vadd.f32 0.0, %v651
    %653 = vdwg.mxu0
    %654 = vrot.lane.b32.xlu0 %v100, 112
    %v655 = vpop.permute.xlu0 %654
    %v658 = vsel %vm42, %v521, 0
    %660 = vmatpush.msra.mxu0 0.0
    %661 = vmatpush.msra.mxu0 0.0
    %662 = vmatpush.msra.mxu0 0.0
    %663 = vmatpush.msra.mxu0 0.0
    %664 = vmatpush.msra.mxu0 0.0
    %665 = vmatpush.msra.mxu0 0.0
    %666 = vmatpush.msra.mxu0 0.0
    %667 = vmatpush.msra.mxu0 0.0
    %668 = vmatpush.msra.mxu0 0.0
    %669 = vmatpush.msra.mxu0 0.0
    %670 = vmatpush.msra.mxu0 0.0
    %671 = vmatpush.msra.mxu0 0.0
    %672 = vmatpush.msra.mxu0 0.0
    %673 = vmatpush.msra.mxu0 0.0
    %674 = vmatpush.msra.mxu0 0.0
    %675 = vmatpush.msra.mxu0 %v655
    %676 = vmatmul.f32.gmra.mxu0 %v658
    %v677 = vpop.f32.mrf.mxu0
    %v678 = vadd.f32 0.0, %v677
    %679 = vdwg.mxu0
    %680 = vrot.lane.b32.xlu0 %v103, 112
    %v681 = vpop.permute.xlu0 %680
    %v684 = vsel %vm42, %v522, 0
    %686 = vmatpush.msra.mxu0 0.0
    %687 = vmatpush.msra.mxu0 0.0
    %688 = vmatpush.msra.mxu0 0.0
    %689 = vmatpush.msra.mxu0 0.0
    %690 = vmatpush.msra.mxu0 0.0
    %691 = vmatpush.msra.mxu0 0.0
    %692 = vmatpush.msra.mxu0 0.0
    %693 = vmatpush.msra.mxu0 0.0
    %694 = vmatpush.msra.mxu0 0.0
    %695 = vmatpush.msra.mxu0 0.0
    %696 = vmatpush.msra.mxu0 0.0
    %697 = vmatpush.msra.mxu0 0.0
    %698 = vmatpush.msra.mxu0 0.0
    %699 = vmatpush.msra.mxu0 0.0
    %700 = vmatpush.msra.mxu0 0.0
    %701 = vmatpush.msra.mxu0 %v681
    %702 = vmatmul.f32.gmra.mxu0 %v684
    %v703 = vpop.f32.mrf.mxu0
    %v704 = vadd.f32 0.0, %v703
    %705 = vdwg.mxu0
    %706 = vrot.lane.b32.xlu0 %v106, 112
    %v707 = vpop.permute.xlu0 %706
    %v710 = vsel %vm42, %v523, 0
    %712 = vmatpush.msra.mxu0 0.0
    %713 = vmatpush.msra.mxu0 0.0
    %714 = vmatpush.msra.mxu0 0.0
    %715 = vmatpush.msra.mxu0 0.0
    %716 = vmatpush.msra.mxu0 0.0
    %717 = vmatpush.msra.mxu0 0.0
    %718 = vmatpush.msra.mxu0 0.0
    %719 = vmatpush.msra.mxu0 0.0
    %720 = vmatpush.msra.mxu0 0.0
    %721 = vmatpush.msra.mxu0 0.0
    %722 = vmatpush.msra.mxu0 0.0
    %723 = vmatpush.msra.mxu0 0.0
    %724 = vmatpush.msra.mxu0 0.0
    %725 = vmatpush.msra.mxu0 0.0
    %726 = vmatpush.msra.mxu0 0.0
    %727 = vmatpush.msra.mxu0 %v707
    %728 = vmatmul.f32.gmra.mxu0 %v710
    %v729 = vpop.f32.mrf.mxu0
    %v730 = vadd.f32 0.0, %v729
    %731 = vdwg.mxu0
    %v732 = vld [vmem:[%s1] sm:$0xff]
    %v733 = vld [vmem:[%s1 + $0x8] sm:$0xff]
    %v734 = vld [vmem:[%s3] sm:$0xff]
    %v735 = vld [vmem:[%s3 + $0x8] sm:$0xff]
    %v737 = vsel %vm42, %v600, 0
    %v740 = vsel %vm42, %v626, 0
    %742 = vmatpush.msra.mxu0 0.0
    %743 = vmatpush.msra.mxu0 0.0
    %744 = vmatpush.msra.mxu0 0.0
    %745 = vmatpush.msra.mxu0 0.0
    %746 = vmatpush.msra.mxu0 0.0
    %747 = vmatpush.msra.mxu0 0.0
    %748 = vmatpush.msra.mxu0 0.0
    %749 = vmatpush.msra.mxu0 0.0
    %750 = vmatpush.msra.mxu0 0.0
    %751 = vmatpush.msra.mxu0 0.0
    %752 = vmatpush.msra.mxu0 0.0
    %753 = vmatpush.msra.mxu0 0.0
    %754 = vmatpush.msra.mxu0 0.0
    %755 = vmatpush.msra.mxu0 0.0
    %756 = vmatpush.msra.mxu0 0.0
    %757 = vmatpush.msra.mxu0 %v735
    %758 = vmatmul.f32.gmra.mxu0 %v737
    %v759 = vpop.f32.mrf.mxu0
    %v760 = vadd.f32 0.0, %v759
    %761 = vmatmul.f32.gmra.mxu0 %v740
    %v762 = vpop.f32.mrf.mxu0
    %v763 = vadd.f32 0.0, %v762
    %764 = vdwg.mxu0
    %v766 = vsel %vm42, %v548, 0
    %v769 = vsel %vm42, %v574, 0
    %771 = vmatpush.msra.mxu0 0.0
    %772 = vmatpush.msra.mxu0 0.0
    %773 = vmatpush.msra.mxu0 0.0
    %774 = vmatpush.msra.mxu0 0.0
    %775 = vmatpush.msra.mxu0 0.0
    %776 = vmatpush.msra.mxu0 0.0
    %777 = vmatpush.msra.mxu0 0.0
    %778 = vmatpush.msra.mxu0 0.0
    %779 = vmatpush.msra.mxu0 0.0
    %780 = vmatpush.msra.mxu0 0.0
    %781 = vmatpush.msra.mxu0 0.0
    %782 = vmatpush.msra.mxu0 0.0
    %783 = vmatpush.msra.mxu0 0.0
    %784 = vmatpush.msra.mxu0 0.0
    %785 = vmatpush.msra.mxu0 0.0
    %786 = vmatpush.msra.mxu0 %v734
    %787 = vmatmul.f32.gmra.mxu0 %v766
    %v788 = vpop.f32.mrf.mxu0
    %v789 = vadd.f32 %v760, %v788
    %790 = vmatmul.f32.gmra.mxu0 %v769
    %v791 = vpop.f32.mrf.mxu0
    %v792 = vadd.f32 %v763, %v791
    %793 = vdwg.mxu0
    %v794 = vld [vmem:[%s3 + $0x10] sm:$0xff]
    %v796 = vsel %vm42, %v652, 0
    %v799 = vsel %vm42, %v678, 0
    %801 = vmatpush.msra.mxu0 0.0
    %802 = vmatpush.msra.mxu0 0.0
    %803 = vmatpush.msra.mxu0 0.0
    %804 = vmatpush.msra.mxu0 0.0
    %805 = vmatpush.msra.mxu0 0.0
    %806 = vmatpush.msra.mxu0 0.0
    %807 = vmatpush.msra.mxu0 0.0
    %808 = vmatpush.msra.mxu0 0.0
    %809 = vmatpush.msra.mxu0 0.0
    %810 = vmatpush.msra.mxu0 0.0
    %811 = vmatpush.msra.mxu0 0.0
    %812 = vmatpush.msra.mxu0 0.0
    %813 = vmatpush.msra.mxu0 0.0
    %814 = vmatpush.msra.mxu0 0.0
    %815 = vmatpush.msra.mxu0 0.0
    %816 = vmatpush.msra.mxu0 %v794
    %817 = vmatmul.f32.gmra.mxu0 %v796
    %v818 = vpop.f32.mrf.mxu0
    %v819 = vadd.f32 0.0, %v818
    %820 = vmatmul.f32.gmra.mxu0 %v799
    %v821 = vpop.f32.mrf.mxu0
    %v822 = vadd.f32 0.0, %v821
    %823 = vdwg.mxu0
    %v824 = vadd.f32 %v789, %v819
    %v825 = vadd.f32 %v792, %v822
    %v826 = vld [vmem:[%s3 + $0x18] sm:$0xff]
    %v828 = vsel %vm42, %v704, 0
    %v831 = vsel %vm42, %v730, 0
    %833 = vmatpush.msra.mxu0 0.0
    %834 = vmatpush.msra.mxu0 0.0
    %835 = vmatpush.msra.mxu0 0.0
    %836 = vmatpush.msra.mxu0 0.0
    %837 = vmatpush.msra.mxu0 0.0
    %838 = vmatpush.msra.mxu0 0.0
    %839 = vmatpush.msra.mxu0 0.0
    %840 = vmatpush.msra.mxu0 0.0
    %841 = vmatpush.msra.mxu0 0.0
    %842 = vmatpush.msra.mxu0 0.0
    %843 = vmatpush.msra.mxu0 0.0
    %844 = vmatpush.msra.mxu0 0.0
    %845 = vmatpush.msra.mxu0 0.0
    %846 = vmatpush.msra.mxu0 0.0
    %847 = vmatpush.msra.mxu0 0.0
    %848 = vmatpush.msra.mxu0 %v826
    %849 = vmatmul.f32.gmra.mxu0 %v828
    %v850 = vpop.f32.mrf.mxu0
    %v851 = vadd.f32 0.0, %v850
    %852 = vmatmul.f32.gmra.mxu0 %v831
    %v853 = vpop.f32.mrf.mxu0
    %v854 = vadd.f32 0.0, %v853
    %855 = vdwg.mxu0
    %v856 = vadd.f32 %v824, %v851
    %v857 = vadd.f32 %v825, %v854
    %v858 = vld [vmem:[%s4] sm:$0x1]
    %v860 = vperm.slane %v858, 0
    %v862 = vadd.f32 %v856, %v860
    %v863 = vadd.f32 %v857, %v860
    %v864 = vadd.f32 %v862, %v732
    %v865 = vadd.f32 %v863, %v733
    %v866 = vld [vmem:[%s5] sm:$0xff]
    %v867 = vld [vmem:[%s5 + $0x8] sm:$0xff]
    %v868 = vld [vmem:[%s5 + $0x10] sm:$0xff]
    %v869 = vld [vmem:[%s5 + $0x18] sm:$0xff]
    %v870 = vld [vmem:[%s6] sm:$0x1]
    %v872 = vperm.slane %v870, 0
    %vm874 = vcmask 261120
    %v876 = vsel %vm874, %v864, 0
    %v879 = vsel %vm874, %v865, 0
    %881 = vmatpush.msra.mxu0 0.0
    %882 = vmatpush.msra.mxu0 0.0
    %883 = vmatpush.msra.mxu0 0.0
    %884 = vmatpush.msra.mxu0 0.0
    %885 = vmatpush.msra.mxu0 0.0
    %886 = vmatpush.msra.mxu0 0.0
    %887 = vmatpush.msra.mxu0 0.0
    %888 = vmatpush.msra.mxu0 0.0
    %889 = vmatpush.msra.mxu0 0.0
    %890 = vmatpush.msra.mxu0 0.0
    %891 = vmatpush.msra.mxu0 0.0
    %892 = vmatpush.msra.mxu0 0.0
    %893 = vmatpush.msra.mxu0 %v869
    %894 = vmatpush.msra.mxu0 %v868
    %895 = vmatpush.msra.mxu0 %v867
    %896 = vmatpush.msra.mxu0 %v866
    %897 = vmatmul.f32.gmra.mxu0 %v876
    %v898 = vpop.f32.mrf.mxu0
    %v899 = vadd.f32 %v872, %v898
    %900 = vmatmul.f32.gmra.mxu0 %v879
    %v901 = vpop.f32.mrf.mxu0
    %v902 = vadd.f32 %v872, %v901
    %903 = vdwg.mxu0
    %v904 = vmax.f32 %v899, 0.0
    %v905 = vmax.f32 %v902, 0.0
    %v906 = vld [vmem:[%s7] sm:$0xff]
    %v907 = vld [vmem:[%s7 + $0x8] sm:$0xff]
    %v908 = vld [vmem:[%s7 + $0x10] sm:$0xff]
    %v909 = vld [vmem:[%s7 + $0x18] sm:$0xff]
    %v910 = vld [vmem:[%s7 + $0x20] sm:$0xff]
    %v911 = vld [vmem:[%s7 + $0x28] sm:$0xff]
    %v912 = vld [vmem:[%s7 + $0x30] sm:$0xff]
    %v913 = vld [vmem:[%s7 + $0x38] sm:$0xff]
    %v914 = vld [vmem:[%s7 + $0x40] sm:$0xff]
    %v915 = vld [vmem:[%s7 + $0x48] sm:$0xff]
    %v916 = vld [vmem:[%s7 + $0x50] sm:$0xff]
    %v917 = vld [vmem:[%s7 + $0x58] sm:$0xff]
    %v918 = vld [vmem:[%s7 + $0x60] sm:$0xff]
    %v919 = vld [vmem:[%s7 + $0x68] sm:$0xff]
    %v920 = vld [vmem:[%s7 + $0x70] sm:$0xff]
    %v921 = vld [vmem:[%s7 + $0x78] sm:$0xff]
    %v922 = vld [vmem:[%s8] sm:$0x1]
    %v924 = vperm.slane %v922, 0
    %926 = vmatpush.msra.mxu0 %v921
    %927 = vmatpush.msra.mxu0 %v920
    %928 = vmatpush.msra.mxu0 %v919
    %929 = vmatpush.msra.mxu0 %v918
    %930 = vmatpush.msra.mxu0 %v917
    %931 = vmatpush.msra.mxu0 %v916
    %932 = vmatpush.msra.mxu0 %v915
    %933 = vmatpush.msra.mxu0 %v914
    %934 = vmatpush.msra.mxu0 %v913
    %935 = vmatpush.msra.mxu0 %v912
    %936 = vmatpush.msra.mxu0 %v911
    %937 = vmatpush.msra.mxu0 %v910
    %938 = vmatpush.msra.mxu0 %v909
    %939 = vmatpush.msra.mxu0 %v908
    %940 = vmatpush.msra.mxu0 %v907
    %941 = vmatpush.msra.mxu0 %v906
    %942 = vmatmul.f32.gmra.mxu0 %v904
    %v943 = vpop.f32.mrf.mxu0
    %v944 = vadd.f32 %v924, %v943
    %945 = vmatmul.f32.gmra.mxu0 %v905
    %v946 = vpop.f32.mrf.mxu0
    %v947 = vadd.f32 %v924, %v946
    %948 = vdwg.mxu0
    %v949 = vmax.f32 %v944, 0.0
    %v950 = vmax.f32 %v947, 0.0
    %951 = vst.msk [vmem:[#allocation2] sm:$0xff] %vm874, %v949
    %952 = vst.msk [vmem:[#allocation2 + $0x8] sm:$0xff] %vm874, %v950
    // Predicated region
    $region38: #{tpu_custom_call.1} parent=1 // pred_check
      _
    $region39: #{tpu_custom_call.1} parent=1 // pred_check_branch
      %954 = sbr.rel (0) target = $region41
    $region40: #{tpu_custom_call.1} parent=1 // pred_region
      %956 = vsyncadd [#allocation3], 0
      %s957 = sshll.u32 [#allocation2], 4
      %s958 = int_to_ptr.vmem [resolvable:$true] %s957
      %s959 = sshll.u32 %s9, 4
      %s960 = int_to_ptr.hbm [resolvable:$true] %s959
      %965 = dma.vmem_to_hbm [thread:$0]  %s958, 256, %s960, [#allocation3], 128, 128, 8
    $region41: #{tpu_custom_call.1} parent=1 // pred_fallthru
      _
    // Predicated region
    $region42: #{tpu_custom_call.1} parent=1 // pred_check
      _
    $region43: #{tpu_custom_call.1} parent=1 // pred_check_branch
      %967 = sbr.rel (0) target = $region45
    $region44: #{tpu_custom_call.1} parent=1 // pred_region
      %969 = dma.done [#allocation3], 256
    $region45: #{tpu_custom_call.1} parent=1 // pred_fallthru
      _
    %970 = vsyncpa [#allocation3], 1

</llo_original>
